<compile_context>
chip_gen: v5e
topology: v5e:2x2
jax: 0.10.0
libtpu: 0.0.40
codegen_flags: <defaults>
</compile_context>

<pallas_src>
import jax
import jax.numpy as jnp
from jax.experimental import pallas as pl
from jax.experimental.pallas import tpu as pltpu


# ----------------------------- sizes -----------------------------------------
B, C, H, W = 2, 4, 16, 16          # example input image batch (NCHW)
D_IN = C * H * W                   # 1024 flattened backbone input
FEAT = 32                          # net.feature dim (== self.in_features)
NUM_CLASSES = 10                   # backbone classifier output (y1)
H1, H2, H3 = 256, 128, 2           # fc1 / fc2 / fc3 output dims
LEAKY_SLOPE = 0.01                 # torch.nn.LeakyReLU default

H1_OFF = 128                       # lane-aligned start of W1 inside packed [FEAT, COMBO_W]
COMBO_W = H1_OFF + H1              # 384
Y2_OFF = 128                       # lane-aligned start of y2 inside the packed output
OUT_W = Y2_OFF + 128               # 256 packed output width


def _leaky_relu(x):
    return jnp.where(x > 0, x, LEAKY_SLOPE * x)


def _round_up(n, m):
    return ((n + m - 1) // m) * m


# ----------------------------- kernel -----------------------------------------
def new_model_kernel(x_ref, noise_ref, wf_ref, wcw1_ref, w2_ref, w3d_ref,
                     bias_ref, out_ref):
    tb = x_ref.shape[0]

    # backbone feature: feat = x @ Wf + bf            ([tb, D_IN] x [D_IN, FEAT])
    x_bf = x_ref[...].astype(jnp.bfloat16)
    feat = jnp.dot(x_bf, wf_ref[...], preferred_element_type=jnp.float32)
    feat = feat + bias_ref[0:1, 0:FEAT]                                   # [tb, FEAT] f32

    # fused {classifier, fc1} on the CLEAN feature:  r = feat @ [Wc | 0 | W1]
    feat_bf = feat.astype(jnp.bfloat16)
    r = jnp.dot(feat_bf, wcw1_ref[...], preferred_element_type=jnp.float32)  # [tb, 384]

    # y1 region (cols 0:128): cols 10:128 of r and of the bias row are exactly zero
    # (zero-padded packing) -> one full-lane 128-wide unmasked store.
    out_ref[:, 0:Y2_OFF] = r[:, 0:Y2_OFF] + bias_ref[1:2, 0:Y2_OFF]

    # fc1 noise contribution via linearity: fc1(feat + n) = feat@W1 + n@W1 + b1
    noise_bf = noise_ref[...].astype(jnp.bfloat16)        # noise already scaled in the wrapper
    n1 = jnp.dot(noise_bf, wcw1_ref[:, H1_OFF:H1_OFF + H1],
                 preferred_element_type=jnp.float32)                      # [tb, 256]
    h1 = _leaky_relu(r[:, H1_OFF:H1_OFF + H1] + n1
                     + bias_ref[1:2, H1_OFF:H1_OFF + H1])                 # [tb, 256]

    # fc2 -> LeakyReLU
    h2 = jnp.dot(h1.astype(jnp.bfloat16), w2_ref[...],
                 preferred_element_type=jnp.float32)
    h2 = _leaky_relu(h2 + bias_ref[2:3, 0:H2])                            # [tb, 128]

    # fc3 + 2-class softmax == sigmoid of the logit difference:
    #   d = h2 @ (w3[:,1]-w3[:,0]) + (b3[1]-b3[0]);  y2 = [1-sigmoid(d), sigmoid(d)]
    # -> no cross-lane reductions, rows sum to 1 exactly.
    d = jnp.dot(h2.astype(jnp.bfloat16), w3d_ref[...],
                preferred_element_type=jnp.float32)                       # [tb, 1]
    d = d + bias_ref[2:3, H2:H2 + 1]
    p1 = 1.0 / (1.0 + jnp.exp(-d))
    p0 = 1.0 - p1

    # y2 region: build one zero-padded [tb, 128] slab -> single full-lane store.
    col = jax.lax.broadcasted_iota(jnp.int32, (tb, OUT_W - Y2_OFF), 1)
    y2_pad = jnp.where(col == 0, p0, jnp.where(col == 1, p1, 0.0))
    out_ref[:, Y2_OFF:OUT_W] = y2_pad


# ----------------------------- wrapper -----------------------------------------
@jax.jit
def new_model_forward(x, epoch_num, packed_params, key):
    """Returns (y1, y2) exactly like NewModel.forward(x, epoch_num)."""
    wf_t, wcw1, w2b, w3d, bias = packed_params
    b = x.shape[0]
    x_flat = x.reshape(b, -1)

    # epoch_num is traced (no recompiles); the scale is folded into the RNG output,
    # so the kernel needs no scale/seed operand at all.
    scale = jnp.sqrt(0.1 / (jnp.asarray(epoch_num, jnp.float32) + 1.0))
    noise = scale * jax.random.normal(key, (b, FEAT), dtype=jnp.float32)

    # batch tiling: 128-row tiles when the batch allows it (fills MXU rows),
    # otherwise a single sublane-aligned tile; weights stay VMEM-resident across tiles.
    tile_b = 128 if b >= 128 else _round_up(b, 8)
    pb = _round_up(b, tile_b)
    if pb != b:
        x_flat = jnp.pad(x_flat, ((0, pb - b), (0, 0)))
        noise = jnp.pad(noise, ((0, pb - b), (0, 0)))

    out = pl.pallas_call(
        new_model_kernel,
        out_shape=jax.ShapeDtypeStruct((pb, OUT_W), jnp.float32),
        grid_spec=pltpu.PrefetchScalarGridSpec(
            num_scalar_prefetch=0,
            grid=(pb // tile_b,),
            in_specs=[
                pl.BlockSpec((tile_b, D_IN), lambda i: (i, 0)),    # x tile
                pl.BlockSpec((tile_b, FEAT), lambda i: (i, 0)),    # scaled noise tile
                pl.BlockSpec((D_IN, FEAT), lambda i: (0, 0)),      # Wf        (VMEM-resident)
                pl.BlockSpec((FEAT, COMBO_W), lambda i: (0, 0)),   # [Wc | W1] (VMEM-resident)
                pl.BlockSpec((H1, H2), lambda i: (0, 0)),          # W2        (VMEM-resident)
                pl.BlockSpec((H2, 1), lambda i: (0, 0)),           # w3 diff   (VMEM-resident)
                pl.BlockSpec((3, COMBO_W), lambda i: (0, 0)),      # packed biases
            ],
            out_specs=pl.BlockSpec((tile_b, OUT_W), lambda i: (i, 0)),
        ),
        compiler_params=pltpu.CompilerParams(
            dimension_semantics=("parallel",)),
    )(x_flat, noise, wf_t, wcw1, w2b, w3d, bias)

    y1 = out[:b, :NUM_CLASSES]
    y2 = out[:b, Y2_OFF:Y2_OFF + H3]
    return y1, y2


# ----------------------------- params ------------------------------------------
def init_params(key):
    """Deterministic synthetic parameters (weights stored as [din, dout], biases [1, dout])."""
    ks = jax.random.split(key, 10)

    def lin(kw, kb, din, dout):
        wt = 0.02 * jax.random.normal(kw, (din, dout), dtype=jnp.float32)
        bias = 0.01 * jax.random.normal(kb, (1, dout), dtype=jnp.float32)
        return wt, bias

    wf, bf = lin(ks[0], ks[1], D_IN, FEAT)         # backbone feature layer
    wc, bc = lin(ks[2], ks[3], FEAT, NUM_CLASSES)  # backbone classifier
    w1, b1 = lin(ks[4], ks[5], FEAT, H1)           # fc1
    w2, b2 = lin(ks[6], ks[7], H1, H2)             # fc2
    w3, b3 = lin(ks[8], ks[9], H2, H3)             # fc3
    return (wf, bf, wc, bc, w1, b1, w2, b2, w3, b3)


def prepare_params(raw):
    """One-time packing of the f32 params into the collapsed, bf16, lane-dense kernel layout."""
    wf, bf, wc, bc, w1, b1, w2, b2, w3, b3 = raw

    wf_t = wf.astype(jnp.bfloat16)                             # [D_IN, FEAT] natural MXU layout

    wcw1 = jnp.zeros((FEAT, COMBO_W), jnp.float32)
    wcw1 = wcw1.at[:, :NUM_CLASSES].set(wc)
    wcw1 = wcw1.at[:, H1_OFF:H1_OFF + H1].set(w1)
    wcw1 = wcw1.astype(jnp.bfloat16)                           # [FEAT, 384]

    w2b = w2.astype(jnp.bfloat16)                              # [256, 128]
    w3d = (w3[:, 1:2] - w3[:, 0:1]).astype(jnp.bfloat16)       # [128, 1] logit-difference column

    bias = jnp.zeros((3, COMBO_W), jnp.float32)
    bias = bias.at[0, :FEAT].set(bf[0])                        # bf       @ row 0, cols 0:32
    bias = bias.at[1, :NUM_CLASSES].set(bc[0])                 # bc       @ row 1, cols 0:10
    bias = bias.at[1, H1_OFF:H1_OFF + H1].set(b1[0])           # b1       @ row 1, cols 128:384
    bias = bias.at[2, :H2].set(b2[0])                          # b2       @ row 2, cols 0:128
    bias = bias.at[2, H2].set(b3[0, 1] - b3[0, 0])             # b3 diff  @ row 2, col 128

    return (wf_t, wcw1, w2b, w3d, bias)


if __name__ == "__main__":
    root = jax.random.PRNGKey(0)
    k_param, k_x, k_noise = jax.random.split(root, 3)

    raw_params = init_params(k_param)
    packed = prepare_params(raw_params)

    x = jax.random.normal(k_x, (B, C, H, W), dtype=jnp.float32)   # NCHW
    epoch_num = 3

    y1, y2 = new_model_forward(x, epoch_num, packed, k_noise)
    jax.block_until_ready((y1, y2))

    assert y1.shape == (B, NUM_CLASSES)
    assert y2.shape == (B, H3)

    # Pure-JAX f32 reference (kernel uses bf16 matmul operands -> loose tolerance).
    wf, bf, wc, bc, w1, b1, w2, b2, w3, b3 = raw_params
    x_flat = x.reshape(B, -1)
    scale = jnp.sqrt(0.1 / (jnp.asarray(epoch_num, jnp.float32) + 1.0))
    noise = scale * jax.random.normal(k_noise, (B, FEAT), dtype=jnp.float32)

    def leaky(v):
        return jnp.where(v > 0, v, LEAKY_SLOPE * v)

    feat_ref = x_flat @ wf + bf
    y1_ref = feat_ref @ wc + bc
    z = feat_ref + noise
    h1_ref = leaky(z @ w1 + b1)
    h2_ref = leaky(h1_ref @ w2 + b2)
    logits_ref = h2_ref @ w3 + b3
    y2_ref = jax.nn.softmax(logits_ref, axis=1)

    assert float(jnp.max(jnp.abs(y1 - y1_ref))) < 5e-2
    assert float(jnp.max(jnp.abs(y2 - y2_ref))) < 2e-2
    assert jnp.allclose(jnp.sum(y2, axis=1), 1.0, atol=1e-5)
    assert bool(jnp.all(jnp.isfinite(y2)))

    print("KERNEL_OK")
</pallas_src>

<mosaic_0001>
module attributes {stable_mosaic.version = 11 : i64} {
  func.func @new_model_kernel(%arg0: i32, %arg1: memref<8x1024xf32, #tpu.memory_space<vmem>>, %arg2: memref<8x32xf32, #tpu.memory_space<vmem>>, %arg3: memref<1024x32xbf16, #tpu.memory_space<vmem>>, %arg4: memref<32x384xbf16, #tpu.memory_space<vmem>>, %arg5: memref<256x128xbf16, #tpu.memory_space<vmem>>, %arg6: memref<128x1xbf16, #tpu.memory_space<vmem>>, %arg7: memref<3x384xf32, #tpu.memory_space<vmem>>, %arg8: memref<8x256xf32, #tpu.memory_space<vmem>>) attributes {dimension_semantics = [#tpu.dimension_semantics<parallel>], iteration_bounds = array<i64: 1>, scalar_prefetch = 0 : i64, scratch_operands = 0 : i64, tpu.core_type = #tpu.core_type<tc>, window_params = [{transform_indices = @transform_0, window_bounds = array<i64: 8, 1024>}, {transform_indices = @transform_1, window_bounds = array<i64: 8, 32>}, {pipeline_mode = #tpu.pipeline_mode<synchronous>, transform_indices = @transform_2, window_bounds = array<i64: 1024, 32>}, {pipeline_mode = #tpu.pipeline_mode<synchronous>, transform_indices = @transform_3, window_bounds = array<i64: 32, 384>}, {pipeline_mode = #tpu.pipeline_mode<synchronous>, transform_indices = @transform_4, window_bounds = array<i64: 256, 128>}, {pipeline_mode = #tpu.pipeline_mode<synchronous>, transform_indices = @transform_5, window_bounds = array<i64: 128, 1>}, {pipeline_mode = #tpu.pipeline_mode<synchronous>, transform_indices = @transform_6, window_bounds = array<i64: 3, 384>}, {transform_indices = @transform_7, window_bounds = array<i64: 8, 256>}]} {
    %c0 = arith.constant 0 : index
    %c0_0 = arith.constant 0 : index
    %0 = vector.load %arg1[%c0, %c0_0] : memref<8x1024xf32, #tpu.memory_space<vmem>>, vector<8x1024xf32>
    %1 = arith.truncf %0 : vector<8x1024xf32> to vector<8x1024xbf16>
    %c0_1 = arith.constant 0 : index
    %c0_2 = arith.constant 0 : index
    %2 = vector.load %arg3[%c0_1, %c0_2] : memref<1024x32xbf16, #tpu.memory_space<vmem>>, vector<1024x32xbf16>
    %cst = arith.constant dense<0.000000e+00> : vector<8x32xf32>
    %3 = tpu.matmul %1, %2, %cst {dimension_numbers = #tpu.dot_dimension_numbers<[1], [0], [0], [1], [0, 0, 1, 1], [], []>} : vector<8x1024xbf16>, vector<1024x32xbf16>, vector<8x32xf32> -> vector<8x32xf32>
    %c0_3 = arith.constant 0 : index
    %c0_4 = arith.constant 0 : index
    %4 = vector.load %arg7[%c0_3, %c0_4] : memref<3x384xf32, #tpu.memory_space<vmem>>, vector<1x32xf32>
    %5 = vector.broadcast %4 : vector<1x32xf32> to vector<8x32xf32>
    %6 = arith.addf %3, %5 : vector<8x32xf32>
    %7 = arith.truncf %6 : vector<8x32xf32> to vector<8x32xbf16>
    %c0_5 = arith.constant 0 : index
    %c0_6 = arith.constant 0 : index
    %8 = vector.load %arg4[%c0_5, %c0_6] : memref<32x384xbf16, #tpu.memory_space<vmem>>, vector<32x384xbf16>
    %cst_7 = arith.constant dense<0.000000e+00> : vector<8x384xf32>
    %9 = tpu.matmul %7, %8, %cst_7 {dimension_numbers = #tpu.dot_dimension_numbers<[1], [0], [0], [1], [0, 0, 1, 1], [], []>} : vector<8x32xbf16>, vector<32x384xbf16>, vector<8x384xf32> -> vector<8x384xf32>
    %10 = vector.extract_strided_slice %9 {offsets = [0, 0], sizes = [8, 128], strides = [1, 1]} : vector<8x384xf32> to vector<8x128xf32>
    %c1 = arith.constant 1 : index
    %c0_8 = arith.constant 0 : index
    %11 = vector.load %arg7[%c1, %c0_8] : memref<3x384xf32, #tpu.memory_space<vmem>>, vector<1x128xf32>
    %12 = vector.broadcast %11 : vector<1x128xf32> to vector<8x128xf32>
    %13 = arith.addf %10, %12 : vector<8x128xf32>
    %c0_9 = arith.constant 0 : index
    %c0_10 = arith.constant 0 : index
    %14 = vector.load %arg8[%c0_9, %c0_10] : memref<8x256xf32, #tpu.memory_space<vmem>>, vector<8x128xf32>
    tpu.vector_store %arg8[%c0_9, %c0_10], %13 {strides = array<i32>} : memref<8x256xf32, #tpu.memory_space<vmem>>, vector<8x128xf32>,
    %c0_11 = arith.constant 0 : index
    %c0_12 = arith.constant 0 : index
    %15 = vector.load %arg2[%c0_11, %c0_12] : memref<8x32xf32, #tpu.memory_space<vmem>>, vector<8x32xf32>
    %16 = arith.truncf %15 : vector<8x32xf32> to vector<8x32xbf16>
    %c0_13 = arith.constant 0 : index
    %c128 = arith.constant 128 : index
    %17 = vector.load %arg4[%c0_13, %c128] : memref<32x384xbf16, #tpu.memory_space<vmem>>, vector<32x256xbf16>
    %cst_14 = arith.constant dense<0.000000e+00> : vector<8x256xf32>
    %18 = tpu.matmul %16, %17, %cst_14 {dimension_numbers = #tpu.dot_dimension_numbers<[1], [0], [0], [1], [0, 0, 1, 1], [], []>} : vector<8x32xbf16>, vector<32x256xbf16>, vector<8x256xf32> -> vector<8x256xf32>
    %19 = vector.extract_strided_slice %9 {offsets = [0, 128], sizes = [8, 256], strides = [1, 1]} : vector<8x384xf32> to vector<8x256xf32>
    %20 = arith.addf %19, %18 : vector<8x256xf32>
    %c1_15 = arith.constant 1 : index
    %c128_16 = arith.constant 128 : index
    %21 = vector.load %arg7[%c1_15, %c128_16] : memref<3x384xf32, #tpu.memory_space<vmem>>, vector<1x256xf32>
    %22 = vector.broadcast %21 : vector<1x256xf32> to vector<8x256xf32>
    %23 = arith.addf %20, %22 : vector<8x256xf32>
    %cst_17 = arith.constant 0.000000e+00 : f32
    %24 = vector.broadcast %cst_17 : f32 to vector<8x256xf32>
    %25 = arith.cmpf ogt, %23, %24 : vector<8x256xf32>
    %cst_18 = arith.constant 0.00999999977 : f32
    %26 = vector.broadcast %cst_18 : f32 to vector<8x256xf32>
    %27 = arith.mulf %26, %23 : vector<8x256xf32>
    %28 = arith.select %25, %23, %27 : vector<8x256xi1>, vector<8x256xf32>
    %29 = arith.truncf %28 : vector<8x256xf32> to vector<8x256xbf16>
    %c0_19 = arith.constant 0 : index
    %c0_20 = arith.constant 0 : index
    %30 = vector.load %arg5[%c0_19, %c0_20] : memref<256x128xbf16, #tpu.memory_space<vmem>>, vector<256x128xbf16>
    %cst_21 = arith.constant dense<0.000000e+00> : vector<8x128xf32>
    %31 = tpu.matmul %29, %30, %cst_21 {dimension_numbers = #tpu.dot_dimension_numbers<[1], [0], [0], [1], [0, 0, 1, 1], [], []>} : vector<8x256xbf16>, vector<256x128xbf16>, vector<8x128xf32> -> vector<8x128xf32>
    %c2 = arith.constant 2 : index
    %c0_22 = arith.constant 0 : index
    %32 = vector.load %arg7[%c2, %c0_22] : memref<3x384xf32, #tpu.memory_space<vmem>>, vector<1x128xf32>
    %33 = vector.broadcast %32 : vector<1x128xf32> to vector<8x128xf32>
    %34 = arith.addf %31, %33 : vector<8x128xf32>
    %cst_23 = arith.constant 0.000000e+00 : f32
    %35 = vector.broadcast %cst_23 : f32 to vector<8x128xf32>
    %36 = arith.cmpf ogt, %34, %35 : vector<8x128xf32>
    %cst_24 = arith.constant 0.00999999977 : f32
    %37 = vector.broadcast %cst_24 : f32 to vector<8x128xf32>
    %38 = arith.mulf %37, %34 : vector<8x128xf32>
    %39 = arith.select %36, %34, %38 : vector<8x128xi1>, vector<8x128xf32>
    %40 = arith.truncf %39 : vector<8x128xf32> to vector<8x128xbf16>
    %c0_25 = arith.constant 0 : index
    %c0_26 = arith.constant 0 : index
    %41 = vector.load %arg6[%c0_25, %c0_26] : memref<128x1xbf16, #tpu.memory_space<vmem>>, vector<128x1xbf16>
    %cst_27 = arith.constant dense<0.000000e+00> : vector<8x1xf32>
    %42 = tpu.matmul %40, %41, %cst_27 {dimension_numbers = #tpu.dot_dimension_numbers<[1], [0], [0], [1], [0, 0, 1, 1], [], []>} : vector<8x128xbf16>, vector<128x1xbf16>, vector<8x1xf32> -> vector<8x1xf32>
    %c2_28 = arith.constant 2 : index
    %c128_29 = arith.constant 128 : index
    %43 = vector.load %arg7[%c2_28, %c128_29] : memref<3x384xf32, #tpu.memory_space<vmem>>, vector<1x1xf32>
    %44 = vector.broadcast %43 : vector<1x1xf32> to vector<8x1xf32>
    %45 = arith.addf %42, %44 : vector<8x1xf32>
    %cst_30 = arith.constant 0.000000e+00 : f32
    %46 = vector.broadcast %cst_30 : f32 to vector<8x1xf32>
    %47 = arith.subf %46, %45 : vector<8x1xf32>
    %48 = math.exp %47 : vector<8x1xf32>
    %cst_31 = arith.constant 1.000000e+00 : f32
    %49 = vector.broadcast %cst_31 : f32 to vector<8x1xf32>
    %50 = arith.addf %49, %48 : vector<8x1xf32>
    %cst_32 = arith.constant 1.000000e+00 : f32
    %51 = vector.broadcast %cst_32 : f32 to vector<8x1xf32>
    %52 = arith.divf %51, %50 : vector<8x1xf32>
    %cst_33 = arith.constant 1.000000e+00 : f32
    %53 = vector.broadcast %cst_33 : f32 to vector<8x1xf32>
    %54 = arith.subf %53, %52 : vector<8x1xf32>
    %55 = tpu.iota {dimensions = array<i32: 1>} : vector<8x128xi32>
    %c0_i32 = arith.constant 0 : i32
    %56 = vector.broadcast %c0_i32 : i32 to vector<8x128xi32>
    %57 = arith.cmpi eq, %55, %56 : vector<8x128xi32>
    %c1_i32 = arith.constant 1 : i32
    %58 = vector.broadcast %c1_i32 : i32 to vector<8x128xi32>
    %59 = arith.cmpi eq, %55, %58 : vector<8x128xi32>
    %cst_34 = arith.constant 0.000000e+00 : f32
    %60 = vector.shape_cast %52 : vector<8x1xf32> to vector<8x1xf32>
    %61 = vector.broadcast %60 : vector<8x1xf32> to vector<8x128xf32>
    %62 = vector.broadcast %cst_34 : f32 to vector<8x128xf32>
    %63 = arith.select %59, %61, %62 : vector<8x128xi1>, vector<8x128xf32>
    %64 = vector.shape_cast %54 : vector<8x1xf32> to vector<8x1xf32>
    %65 = vector.broadcast %64 : vector<8x1xf32> to vector<8x128xf32>
    %66 = arith.select %57, %65, %63 : vector<8x128xi1>, vector<8x128xf32>
    %c0_35 = arith.constant 0 : index
    %c128_36 = arith.constant 128 : index
    %67 = vector.load %arg8[%c0_35, %c128_36] : memref<8x256xf32, #tpu.memory_space<vmem>>, vector<8x128xf32>
    tpu.vector_store %arg8[%c0_35, %c128_36], %66 {strides = array<i32>} : memref<8x256xf32, #tpu.memory_space<vmem>>, vector<8x128xf32>,
    return
  }
  func.func @transform_0(%arg0: i32) -> (i32, i32) {
    %c0_i32 = arith.constant 0 : i32
    %c0_i32_0 = arith.constant 0 : i32
    return %arg0, %c0_i32 : i32, i32
  }
  func.func @transform_1(%arg0: i32) -> (i32, i32) {
    %c0_i32 = arith.constant 0 : i32
    %c0_i32_0 = arith.constant 0 : i32
    return %arg0, %c0_i32 : i32, i32
  }
  func.func @transform_2(%arg0: i32) -> (i32, i32) {
    %c0_i32 = arith.constant 0 : i32
    %c0_i32_0 = arith.constant 0 : i32
    %c0_i32_1 = arith.constant 0 : i32
    return %c0_i32, %c0_i32_0 : i32, i32
  }
  func.func @transform_3(%arg0: i32) -> (i32, i32) {
    %c0_i32 = arith.constant 0 : i32
    %c0_i32_0 = arith.constant 0 : i32
    %c0_i32_1 = arith.constant 0 : i32
    return %c0_i32, %c0_i32_0 : i32, i32
  }
  func.func @transform_4(%arg0: i32) -> (i32, i32) {
    %c0_i32 = arith.constant 0 : i32
    %c0_i32_0 = arith.constant 0 : i32
    %c0_i32_1 = arith.constant 0 : i32
    return %c0_i32, %c0_i32_0 : i32, i32
  }
  func.func @transform_5(%arg0: i32) -> (i32, i32) {
    %c0_i32 = arith.constant 0 : i32
    %c0_i32_0 = arith.constant 0 : i32
    %c0_i32_1 = arith.constant 0 : i32
    return %c0_i32, %c0_i32_0 : i32, i32
  }
  func.func @transform_6(%arg0: i32) -> (i32, i32) {
    %c0_i32 = arith.constant 0 : i32
    %c0_i32_0 = arith.constant 0 : i32
    %c0_i32_1 = arith.constant 0 : i32
    return %c0_i32, %c0_i32_0 : i32, i32
  }
  func.func @transform_7(%arg0: i32) -> (i32, i32) {
    %c0_i32 = arith.constant 0 : i32
    %c0_i32_0 = arith.constant 0 : i32
    return %arg0, %c0_i32 : i32, i32
  }
}

</mosaic_0001>

<llo_original>
// kernel: new_model_forward.1
$region0: #{new_model_forward.1}
  #allocation0 [shape = 'u32[]', space=smem, size = 0x4, offset = 0x4, fixed_abs, tag = 'smem constant byte address 0x4 - core index']
  #allocation1 [shape = 'u32[72,128]{1,0:T(1,128)}', space=vmem, size = 0x9000, scoped, tag = 'internal scratch']
  %s0 = inlined_call_operand.vmem [shape: f32[8,1024], index: 0, kind: input, shape index: {}]
  %s1 = inlined_call_operand.vmem [shape: f32[8,32], index: 1, kind: input, shape index: {}]
  %s2 = inlined_call_operand.vmem [shape: bf16[1024,32], index: 2, kind: input, shape index: {}]
  %s3 = inlined_call_operand.vmem [shape: bf16[32,384], index: 3, kind: input, shape index: {}]
  %s4 = inlined_call_operand.vmem [shape: bf16[256,128], index: 4, kind: input, shape index: {}]
  %s5 = inlined_call_operand.vmem [shape: bf16[128,1], index: 5, kind: input, shape index: {}]
  %s6 = inlined_call_operand.vmem [shape: f32[3,384], index: 6, kind: input, shape index: {}]
  %s7 = inlined_call_operand.vmem [shape: f32[8,256], index: 7, kind: output, shape index: {}]
  %s8 = sld [smem:[#allocation0]]
  $region38: #{new_model_forward.1} parent=0
    _
  %s10 = ssub.s32 1, %s8
  %s11 = scalar_select 0, %s10, %s8
  // Predicated region
  $region2: #{new_model_forward.1} parent=0 // pred_check
    _
  $region3: #{new_model_forward.1} parent=0 // pred_check_branch
    %13 = sbr.rel (0) target = $region5
  $region4: #{new_model_forward.1} parent=0 // pred_region
    _
  $region5: #{new_model_forward.1} parent=0 // pred_fallthru
    _
  // Predicated region
  $region6: #{new_model_forward.1} parent=0 // pred_check
    _
  $region7: #{new_model_forward.1} parent=0 // pred_check_branch
    %15 = sbr.rel (0) target = $region9
  $region8: #{new_model_forward.1} parent=0 // pred_region
    _
  $region9: #{new_model_forward.1} parent=0 // pred_fallthru
    _
  // Predicated region
  $region10: #{new_model_forward.1} parent=0 // pred_check
    _
  $region11: #{new_model_forward.1} parent=0 // pred_check_branch
    %17 = sbr.rel (0) target = $region13
  $region12: #{new_model_forward.1} parent=0 // pred_region
    _
  $region13: #{new_model_forward.1} parent=0 // pred_fallthru
    _
  // Predicated region
  $region14: #{new_model_forward.1} parent=0 // pred_check
    _
  $region15: #{new_model_forward.1} parent=0 // pred_check_branch
    %19 = sbr.rel (0) target = $region17
  $region16: #{new_model_forward.1} parent=0 // pred_region
    _
  $region17: #{new_model_forward.1} parent=0 // pred_fallthru
    _
  // Predicated region
  $region18: #{new_model_forward.1} parent=0 // pred_check
    _
  $region19: #{new_model_forward.1} parent=0 // pred_check_branch
    %21 = sbr.rel (0) target = $region21
  $region20: #{new_model_forward.1} parent=0 // pred_region
    _
  $region21: #{new_model_forward.1} parent=0 // pred_fallthru
    _
  // Predicated region
  $region22: #{new_model_forward.1} parent=0 // pred_check
    _
  $region23: #{new_model_forward.1} parent=0 // pred_check_branch
    %23 = sbr.rel (0) target = $region25
  $region24: #{new_model_forward.1} parent=0 // pred_region
    _
  $region25: #{new_model_forward.1} parent=0 // pred_fallthru
    _
  // Predicated region
  $region26: #{new_model_forward.1} parent=0 // pred_check
    _
  $region27: #{new_model_forward.1} parent=0 // pred_check_branch
    %25 = sbr.rel (0) target = $region29
  $region28: #{new_model_forward.1} parent=0 // pred_region
    _
  $region29: #{new_model_forward.1} parent=0 // pred_fallthru
    _
  %v27 = vld [vmem:[%s0] sm:$0xff]
  %v28 = vld [vmem:[%s0 + $0x8] sm:$0xff]
  %v29 = vld [vmem:[%s0 + $0x10] sm:$0xff]
  %v30 = vld [vmem:[%s0 + $0x18] sm:$0xff]
  %v31 = vld [vmem:[%s0 + $0x20] sm:$0xff]
  %v32 = vld [vmem:[%s0 + $0x28] sm:$0xff]
  %v33 = vld [vmem:[%s0 + $0x30] sm:$0xff]
  %v34 = vld [vmem:[%s0 + $0x38] sm:$0xff]
  %v35 = vpack.c.bf16 %v27, %v27
  %v36 = vpack.c.bf16 %v28, %v28
  %v37 = vpack.c.bf16 %v29, %v29
  %v38 = vpack.c.bf16 %v30, %v30
  %v39 = vpack.c.bf16 %v31, %v31
  %v40 = vpack.c.bf16 %v32, %v32
  %v41 = vpack.c.bf16 %v33, %v33
  %v42 = vpack.c.bf16 %v34, %v34
  %v43 = vld [vmem:[%s2] sm:$0xf]
  %v44 = vld [vmem:[%s2 + $0x4] sm:$0xf]
  %v45 = vld [vmem:[%s2 + $0x8] sm:$0xf]
  %v46 = vld [vmem:[%s2 + $0xc] sm:$0xf]
  %v47 = vld [vmem:[%s2 + $0x10] sm:$0xf]
  %v48 = vld [vmem:[%s2 + $0x14] sm:$0xf]
  %v49 = vld [vmem:[%s2 + $0x18] sm:$0xf]
  %v50 = vld [vmem:[%s2 + $0x1c] sm:$0xf]
  %v51 = vld [vmem:[%s2 + $0x20] sm:$0xf]
  %v52 = vld [vmem:[%s2 + $0x24] sm:$0xf]
  %v53 = vld [vmem:[%s2 + $0x28] sm:$0xf]
  %v54 = vld [vmem:[%s2 + $0x2c] sm:$0xf]
  %v55 = vld [vmem:[%s2 + $0x30] sm:$0xf]
  %v56 = vld [vmem:[%s2 + $0x34] sm:$0xf]
  %v57 = vld [vmem:[%s2 + $0x38] sm:$0xf]
  %v58 = vld [vmem:[%s2 + $0x3c] sm:$0xf]
  %v59 = vld [vmem:[%s2 + $0x40] sm:$0xf]
  %v60 = vld [vmem:[%s2 + $0x44] sm:$0xf]
  %v61 = vld [vmem:[%s2 + $0x48] sm:$0xf]
  %v62 = vld [vmem:[%s2 + $0x4c] sm:$0xf]
  %v63 = vld [vmem:[%s2 + $0x50] sm:$0xf]
  %v64 = vld [vmem:[%s2 + $0x54] sm:$0xf]
  %v65 = vld [vmem:[%s2 + $0x58] sm:$0xf]
  %v66 = vld [vmem:[%s2 + $0x5c] sm:$0xf]
  %v67 = vld [vmem:[%s2 + $0x60] sm:$0xf]
  %v68 = vld [vmem:[%s2 + $0x64] sm:$0xf]
  %v69 = vld [vmem:[%s2 + $0x68] sm:$0xf]
  %v70 = vld [vmem:[%s2 + $0x6c] sm:$0xf]
  %v71 = vld [vmem:[%s2 + $0x70] sm:$0xf]
  %v72 = vld [vmem:[%s2 + $0x74] sm:$0xf]
  %v73 = vld [vmem:[%s2 + $0x78] sm:$0xf]
  %v74 = vld [vmem:[%s2 + $0x7c] sm:$0xf]
  %v75 = vld [vmem:[%s2 + $0x80] sm:$0xf]
  %v76 = vld [vmem:[%s2 + $0x84] sm:$0xf]
  %v77 = vld [vmem:[%s2 + $0x88] sm:$0xf]
  %v78 = vld [vmem:[%s2 + $0x8c] sm:$0xf]
  %v79 = vld [vmem:[%s2 + $0x90] sm:$0xf]
  %v80 = vld [vmem:[%s2 + $0x94] sm:$0xf]
  %v81 = vld [vmem:[%s2 + $0x98] sm:$0xf]
  %v82 = vld [vmem:[%s2 + $0x9c] sm:$0xf]
  %v83 = vld [vmem:[%s2 + $0xa0] sm:$0xf]
  %v84 = vld [vmem:[%s2 + $0xa4] sm:$0xf]
  %v85 = vld [vmem:[%s2 + $0xa8] sm:$0xf]
  %v86 = vld [vmem:[%s2 + $0xac] sm:$0xf]
  %v87 = vld [vmem:[%s2 + $0xb0] sm:$0xf]
  %v88 = vld [vmem:[%s2 + $0xb4] sm:$0xf]
  %v89 = vld [vmem:[%s2 + $0xb8] sm:$0xf]
  %v90 = vld [vmem:[%s2 + $0xbc] sm:$0xf]
  %v91 = vld [vmem:[%s2 + $0xc0] sm:$0xf]
  %v92 = vld [vmem:[%s2 + $0xc4] sm:$0xf]
  %v93 = vld [vmem:[%s2 + $0xc8] sm:$0xf]
  %v94 = vld [vmem:[%s2 + $0xcc] sm:$0xf]
  %v95 = vld [vmem:[%s2 + $0xd0] sm:$0xf]
  %v96 = vld [vmem:[%s2 + $0xd4] sm:$0xf]
  %v97 = vld [vmem:[%s2 + $0xd8] sm:$0xf]
  %v98 = vld [vmem:[%s2 + $0xdc] sm:$0xf]
  %v99 = vld [vmem:[%s2 + $0xe0] sm:$0xf]
  %v100 = vld [vmem:[%s2 + $0xe4] sm:$0xf]
  %v101 = vld [vmem:[%s2 + $0xe8] sm:$0xf]
  %v102 = vld [vmem:[%s2 + $0xec] sm:$0xf]
  %v103 = vld [vmem:[%s2 + $0xf0] sm:$0xf]
  %v104 = vld [vmem:[%s2 + $0xf4] sm:$0xf]
  %v105 = vld [vmem:[%s2 + $0xf8] sm:$0xf]
  %v106 = vld [vmem:[%s2 + $0xfc] sm:$0xf]
  %v107 = vld [vmem:[%s2 + $0x100] sm:$0xf]
  %v108 = vld [vmem:[%s2 + $0x104] sm:$0xf]
  %v109 = vld [vmem:[%s2 + $0x108] sm:$0xf]
  %v110 = vld [vmem:[%s2 + $0x10c] sm:$0xf]
  %v111 = vld [vmem:[%s2 + $0x110] sm:$0xf]
  %v112 = vld [vmem:[%s2 + $0x114] sm:$0xf]
  %v113 = vld [vmem:[%s2 + $0x118] sm:$0xf]
  %v114 = vld [vmem:[%s2 + $0x11c] sm:$0xf]
  %v115 = vld [vmem:[%s2 + $0x120] sm:$0xf]
  %v116 = vld [vmem:[%s2 + $0x124] sm:$0xf]
  %v117 = vld [vmem:[%s2 + $0x128] sm:$0xf]
  %v118 = vld [vmem:[%s2 + $0x12c] sm:$0xf]
  %v119 = vld [vmem:[%s2 + $0x130] sm:$0xf]
  %v120 = vld [vmem:[%s2 + $0x134] sm:$0xf]
  %v121 = vld [vmem:[%s2 + $0x138] sm:$0xf]
  %v122 = vld [vmem:[%s2 + $0x13c] sm:$0xf]
  %v123 = vld [vmem:[%s2 + $0x140] sm:$0xf]
  %v124 = vld [vmem:[%s2 + $0x144] sm:$0xf]
  %v125 = vld [vmem:[%s2 + $0x148] sm:$0xf]
  %v126 = vld [vmem:[%s2 + $0x14c] sm:$0xf]
  %v127 = vld [vmem:[%s2 + $0x150] sm:$0xf]
  %v128 = vld [vmem:[%s2 + $0x154] sm:$0xf]
  %v129 = vld [vmem:[%s2 + $0x158] sm:$0xf]
  %v130 = vld [vmem:[%s2 + $0x15c] sm:$0xf]
  %v131 = vld [vmem:[%s2 + $0x160] sm:$0xf]
  %v132 = vld [vmem:[%s2 + $0x164] sm:$0xf]
  %v133 = vld [vmem:[%s2 + $0x168] sm:$0xf]
  %v134 = vld [vmem:[%s2 + $0x16c] sm:$0xf]
  %v135 = vld [vmem:[%s2 + $0x170] sm:$0xf]
  %v136 = vld [vmem:[%s2 + $0x174] sm:$0xf]
  %v137 = vld [vmem:[%s2 + $0x178] sm:$0xf]
  %v138 = vld [vmem:[%s2 + $0x17c] sm:$0xf]
  %v139 = vld [vmem:[%s2 + $0x180] sm:$0xf]
  %v140 = vld [vmem:[%s2 + $0x184] sm:$0xf]
  %v141 = vld [vmem:[%s2 + $0x188] sm:$0xf]
  %v142 = vld [vmem:[%s2 + $0x18c] sm:$0xf]
  %v143 = vld [vmem:[%s2 + $0x190] sm:$0xf]
  %v144 = vld [vmem:[%s2 + $0x194] sm:$0xf]
  %v145 = vld [vmem:[%s2 + $0x198] sm:$0xf]
  %v146 = vld [vmem:[%s2 + $0x19c] sm:$0xf]
  %v147 = vld [vmem:[%s2 + $0x1a0] sm:$0xf]
  %v148 = vld [vmem:[%s2 + $0x1a4] sm:$0xf]
  %v149 = vld [vmem:[%s2 + $0x1a8] sm:$0xf]
  %v150 = vld [vmem:[%s2 + $0x1ac] sm:$0xf]
  %v151 = vld [vmem:[%s2 + $0x1b0] sm:$0xf]
  %v152 = vld [vmem:[%s2 + $0x1b4] sm:$0xf]
  %v153 = vld [vmem:[%s2 + $0x1b8] sm:$0xf]
  %v154 = vld [vmem:[%s2 + $0x1bc] sm:$0xf]
  %v155 = vld [vmem:[%s2 + $0x1c0] sm:$0xf]
  %v156 = vld [vmem:[%s2 + $0x1c4] sm:$0xf]
  %v157 = vld [vmem:[%s2 + $0x1c8] sm:$0xf]
  %v158 = vld [vmem:[%s2 + $0x1cc] sm:$0xf]
  %v159 = vld [vmem:[%s2 + $0x1d0] sm:$0xf]
  %v160 = vld [vmem:[%s2 + $0x1d4] sm:$0xf]
  %v161 = vld [vmem:[%s2 + $0x1d8] sm:$0xf]
  %v162 = vld [vmem:[%s2 + $0x1dc] sm:$0xf]
  %v163 = vld [vmem:[%s2 + $0x1e0] sm:$0xf]
  %v164 = vld [vmem:[%s2 + $0x1e4] sm:$0xf]
  %v165 = vld [vmem:[%s2 + $0x1e8] sm:$0xf]
  %v166 = vld [vmem:[%s2 + $0x1ec] sm:$0xf]
  %v167 = vld [vmem:[%s2 + $0x1f0] sm:$0xf]
  %v168 = vld [vmem:[%s2 + $0x1f4] sm:$0xf]
  %v169 = vld [vmem:[%s2 + $0x1f8] sm:$0xf]
  %v170 = vld [vmem:[%s2 + $0x1fc] sm:$0xf]
  %v171 = vld [vmem:[%s6] sm:$0x1]
  %v172 = vperm.slane %v171, 0
  %v301 = vunpack.c.l.b16 %v43
  %v302 = vunpack.c.l.b16 %v44
  %v303 = vunpack.c.l.b16 %v45
  %v304 = vunpack.c.l.b16 %v46
  %v305 = vunpack.c.l.b16 %v47
  %v306 = vunpack.c.l.b16 %v48
  %v307 = vunpack.c.l.b16 %v49
  %v308 = vunpack.c.l.b16 %v50
  %v309 = vunpack.c.l.b16 %v51
  %v310 = vunpack.c.l.b16 %v52
  %v311 = vunpack.c.l.b16 %v53
  %v312 = vunpack.c.l.b16 %v54
  %v313 = vunpack.c.l.b16 %v55
  %v314 = vunpack.c.l.b16 %v56
  %v315 = vunpack.c.l.b16 %v57
  %v316 = vunpack.c.l.b16 %v58
  %v317 = vunpack.c.l.b16 %v59
  %v318 = vunpack.c.l.b16 %v60
  %v319 = vunpack.c.l.b16 %v61
  %v320 = vunpack.c.l.b16 %v62
  %v321 = vunpack.c.l.b16 %v63
  %v322 = vunpack.c.l.b16 %v64
  %v323 = vunpack.c.l.b16 %v65
  %v324 = vunpack.c.l.b16 %v66
  %v325 = vunpack.c.l.b16 %v67
  %v326 = vunpack.c.l.b16 %v68
  %v327 = vunpack.c.l.b16 %v69
  %v328 = vunpack.c.l.b16 %v70
  %v329 = vunpack.c.l.b16 %v71
  %v330 = vunpack.c.l.b16 %v72
  %v331 = vunpack.c.l.b16 %v73
  %v332 = vunpack.c.l.b16 %v74
  %v333 = vunpack.c.l.b16 %v75
  %v334 = vunpack.c.l.b16 %v76
  %v335 = vunpack.c.l.b16 %v77
  %v336 = vunpack.c.l.b16 %v78
  %v337 = vunpack.c.l.b16 %v79
  %v338 = vunpack.c.l.b16 %v80
  %v339 = vunpack.c.l.b16 %v81
  %v340 = vunpack.c.l.b16 %v82
  %v341 = vunpack.c.l.b16 %v83
  %v342 = vunpack.c.l.b16 %v84
  %v343 = vunpack.c.l.b16 %v85
  %v344 = vunpack.c.l.b16 %v86
  %v345 = vunpack.c.l.b16 %v87
  %v346 = vunpack.c.l.b16 %v88
  %v347 = vunpack.c.l.b16 %v89
  %v348 = vunpack.c.l.b16 %v90
  %v349 = vunpack.c.l.b16 %v91
  %v350 = vunpack.c.l.b16 %v92
  %v351 = vunpack.c.l.b16 %v93
  %v352 = vunpack.c.l.b16 %v94
  %v353 = vunpack.c.l.b16 %v95
  %v354 = vunpack.c.l.b16 %v96
  %v355 = vunpack.c.l.b16 %v97
  %v356 = vunpack.c.l.b16 %v98
  %v357 = vunpack.c.l.b16 %v99
  %v358 = vunpack.c.l.b16 %v100
  %v359 = vunpack.c.l.b16 %v101
  %v360 = vunpack.c.l.b16 %v102
  %v361 = vunpack.c.l.b16 %v103
  %v362 = vunpack.c.l.b16 %v104
  %v363 = vunpack.c.l.b16 %v105
  %v364 = vunpack.c.l.b16 %v106
  %v365 = vunpack.c.l.b16 %v107
  %v366 = vunpack.c.l.b16 %v108
  %v367 = vunpack.c.l.b16 %v109
  %v368 = vunpack.c.l.b16 %v110
  %v369 = vunpack.c.l.b16 %v111
  %v370 = vunpack.c.l.b16 %v112
  %v371 = vunpack.c.l.b16 %v113
  %v372 = vunpack.c.l.b16 %v114
  %v373 = vunpack.c.l.b16 %v115
  %v374 = vunpack.c.l.b16 %v116
  %v375 = vunpack.c.l.b16 %v117
  %v376 = vunpack.c.l.b16 %v118
  %v377 = vunpack.c.l.b16 %v119
  %v378 = vunpack.c.l.b16 %v120
  %v379 = vunpack.c.l.b16 %v121
  %v380 = vunpack.c.l.b16 %v122
  %v381 = vunpack.c.l.b16 %v123
  %v382 = vunpack.c.l.b16 %v124
  %v383 = vunpack.c.l.b16 %v125
  %v384 = vunpack.c.l.b16 %v126
  %v385 = vunpack.c.l.b16 %v127
  %v386 = vunpack.c.l.b16 %v128
  %v387 = vunpack.c.l.b16 %v129
  %v388 = vunpack.c.l.b16 %v130
  %v389 = vunpack.c.l.b16 %v131
  %v390 = vunpack.c.l.b16 %v132
  %v391 = vunpack.c.l.b16 %v133
  %v392 = vunpack.c.l.b16 %v134
  %v393 = vunpack.c.l.b16 %v135
  %v394 = vunpack.c.l.b16 %v136
  %v395 = vunpack.c.l.b16 %v137
  %v396 = vunpack.c.l.b16 %v138
  %v397 = vunpack.c.l.b16 %v139
  %v398 = vunpack.c.l.b16 %v140
  %v399 = vunpack.c.l.b16 %v141
  %v400 = vunpack.c.l.b16 %v142
  %v401 = vunpack.c.l.b16 %v143
  %v402 = vunpack.c.l.b16 %v144
  %v403 = vunpack.c.l.b16 %v145
  %v404 = vunpack.c.l.b16 %v146
  %v405 = vunpack.c.l.b16 %v147
  %v406 = vunpack.c.l.b16 %v148
  %v407 = vunpack.c.l.b16 %v149
  %v408 = vunpack.c.l.b16 %v150
  %v409 = vunpack.c.l.b16 %v151
  %v410 = vunpack.c.l.b16 %v152
  %v411 = vunpack.c.l.b16 %v153
  %v412 = vunpack.c.l.b16 %v154
  %v413 = vunpack.c.l.b16 %v155
  %v414 = vunpack.c.l.b16 %v156
  %v415 = vunpack.c.l.b16 %v157
  %v416 = vunpack.c.l.b16 %v158
  %v417 = vunpack.c.l.b16 %v159
  %v418 = vunpack.c.l.b16 %v160
  %v419 = vunpack.c.l.b16 %v161
  %v420 = vunpack.c.l.b16 %v162
  %v421 = vunpack.c.l.b16 %v163
  %v422 = vunpack.c.l.b16 %v164
  %v423 = vunpack.c.l.b16 %v165
  %v424 = vunpack.c.l.b16 %v166
  %v425 = vunpack.c.l.b16 %v167
  %v426 = vunpack.c.l.b16 %v168
  %v427 = vunpack.c.l.b16 %v169
  %v428 = vunpack.c.l.b16 %v170
  %v429 = vpack.c.b16 %v302, %v301
  %v430 = vpack.c.b16 %v304, %v303
  %v431 = vpack.c.b16 %v306, %v305
  %v432 = vpack.c.b16 %v308, %v307
  %v433 = vpack.c.b16 %v310, %v309
  %v434 = vpack.c.b16 %v312, %v311
  %v435 = vpack.c.b16 %v314, %v313
  %v436 = vpack.c.b16 %v316, %v315
  %v437 = vpack.c.b16 %v318, %v317
  %v438 = vpack.c.b16 %v320, %v319
  %v439 = vpack.c.b16 %v322, %v321
  %v440 = vpack.c.b16 %v324, %v323
  %v441 = vpack.c.b16 %v326, %v325
  %v442 = vpack.c.b16 %v328, %v327
  %v443 = vpack.c.b16 %v330, %v329
  %v444 = vpack.c.b16 %v332, %v331
  %v445 = vpack.c.b16 %v334, %v333
  %v446 = vpack.c.b16 %v336, %v335
  %v447 = vpack.c.b16 %v338, %v337
  %v448 = vpack.c.b16 %v340, %v339
  %v449 = vpack.c.b16 %v342, %v341
  %v450 = vpack.c.b16 %v344, %v343
  %v451 = vpack.c.b16 %v346, %v345
  %v452 = vpack.c.b16 %v348, %v347
  %v453 = vpack.c.b16 %v350, %v349
  %v454 = vpack.c.b16 %v352, %v351
  %v455 = vpack.c.b16 %v354, %v353
  %v456 = vpack.c.b16 %v356, %v355
  %v457 = vpack.c.b16 %v358, %v357
  %v458 = vpack.c.b16 %v360, %v359
  %v459 = vpack.c.b16 %v362, %v361
  %v460 = vpack.c.b16 %v364, %v363
  %v461 = vpack.c.b16 %v366, %v365
  %v462 = vpack.c.b16 %v368, %v367
  %v463 = vpack.c.b16 %v370, %v369
  %v464 = vpack.c.b16 %v372, %v371
  %v465 = vpack.c.b16 %v374, %v373
  %v466 = vpack.c.b16 %v376, %v375
  %v467 = vpack.c.b16 %v378, %v377
  %v468 = vpack.c.b16 %v380, %v379
  %v469 = vpack.c.b16 %v382, %v381
  %v470 = vpack.c.b16 %v384, %v383
  %v471 = vpack.c.b16 %v386, %v385
  %v472 = vpack.c.b16 %v388, %v387
  %v473 = vpack.c.b16 %v390, %v389
  %v474 = vpack.c.b16 %v392, %v391
  %v475 = vpack.c.b16 %v394, %v393
  %v476 = vpack.c.b16 %v396, %v395
  %v477 = vpack.c.b16 %v398, %v397
  %v478 = vpack.c.b16 %v400, %v399
  %v479 = vpack.c.b16 %v402, %v401
  %v480 = vpack.c.b16 %v404, %v403
  %v481 = vpack.c.b16 %v406, %v405
  %v482 = vpack.c.b16 %v408, %v407
  %v483 = vpack.c.b16 %v410, %v409
  %v484 = vpack.c.b16 %v412, %v411
  %v485 = vpack.c.b16 %v414, %v413
  %v486 = vpack.c.b16 %v416, %v415
  %v487 = vpack.c.b16 %v418, %v417
  %v488 = vpack.c.b16 %v420, %v419
  %v489 = vpack.c.b16 %v422, %v421
  %v490 = vpack.c.b16 %v424, %v423
  %v491 = vpack.c.b16 %v426, %v425
  %v492 = vpack.c.b16 %v428, %v427
  %557 = vmatpush.bf16.msra.mxu0 %v436
  %558 = vmatpush.bf16.msra.mxu0 %v435
  %559 = vmatpush.bf16.msra.mxu0 %v434
  %560 = vmatpush.bf16.msra.mxu0 %v433
  %561 = vmatpush.bf16.msra.mxu0 %v432
  %562 = vmatpush.bf16.msra.mxu0 %v431
  %563 = vmatpush.bf16.msra.mxu0 %v430
  %564 = vmatpush.bf16.msra.mxu0 %v429
  %565 = vmatmul.bf16.gmra.mxu0 %v35
  %v566 = vpop.f32.mrf.mxu0
  %v567 = vadd.f32 %v172, %v566
  %v568 = vpop.f32.mrf.mxu0
  %569 = vdwg.mxu0
  %570 = vmatpush.bf16.msra.mxu0 %v444
  %571 = vmatpush.bf16.msra.mxu0 %v443
  %572 = vmatpush.bf16.msra.mxu0 %v442
  %573 = vmatpush.bf16.msra.mxu0 %v441
  %574 = vmatpush.bf16.msra.mxu0 %v440
  %575 = vmatpush.bf16.msra.mxu0 %v439
  %576 = vmatpush.bf16.msra.mxu0 %v438
  %577 = vmatpush.bf16.msra.mxu0 %v437
  %578 = vmatmul.bf16.gmra.mxu0 %v36
  %v579 = vpop.f32.mrf.mxu0
  %v580 = vadd.f32 %v567, %v579
  %v581 = vpop.f32.mrf.mxu0
  %582 = vdwg.mxu0
  %583 = vmatpush.bf16.msra.mxu0 %v452
  %584 = vmatpush.bf16.msra.mxu0 %v451
  %585 = vmatpush.bf16.msra.mxu0 %v450
  %586 = vmatpush.bf16.msra.mxu0 %v449
  %587 = vmatpush.bf16.msra.mxu0 %v448
  %588 = vmatpush.bf16.msra.mxu0 %v447
  %589 = vmatpush.bf16.msra.mxu0 %v446
  %590 = vmatpush.bf16.msra.mxu0 %v445
  %591 = vmatmul.bf16.gmra.mxu0 %v37
  %v592 = vpop.f32.mrf.mxu0
  %v593 = vadd.f32 %v580, %v592
  %v594 = vpop.f32.mrf.mxu0
  %595 = vdwg.mxu0
  %596 = vmatpush.bf16.msra.mxu0 %v460
  %597 = vmatpush.bf16.msra.mxu0 %v459
  %598 = vmatpush.bf16.msra.mxu0 %v458
  %599 = vmatpush.bf16.msra.mxu0 %v457
  %600 = vmatpush.bf16.msra.mxu0 %v456
  %601 = vmatpush.bf16.msra.mxu0 %v455
  %602 = vmatpush.bf16.msra.mxu0 %v454
  %603 = vmatpush.bf16.msra.mxu0 %v453
  %604 = vmatmul.bf16.gmra.mxu0 %v38
  %v605 = vpop.f32.mrf.mxu0
  %v606 = vadd.f32 %v593, %v605
  %v607 = vpop.f32.mrf.mxu0
  %608 = vdwg.mxu0
  %609 = vmatpush.bf16.msra.mxu0 %v468
  %610 = vmatpush.bf16.msra.mxu0 %v467
  %611 = vmatpush.bf16.msra.mxu0 %v466
  %612 = vmatpush.bf16.msra.mxu0 %v465
  %613 = vmatpush.bf16.msra.mxu0 %v464
  %614 = vmatpush.bf16.msra.mxu0 %v463
  %615 = vmatpush.bf16.msra.mxu0 %v462
  %616 = vmatpush.bf16.msra.mxu0 %v461
  %617 = vmatmul.bf16.gmra.mxu0 %v39
  %v618 = vpop.f32.mrf.mxu0
  %v619 = vadd.f32 %v606, %v618
  %v620 = vpop.f32.mrf.mxu0
  %621 = vdwg.mxu0
  %622 = vmatpush.bf16.msra.mxu0 %v476
  %623 = vmatpush.bf16.msra.mxu0 %v475
  %624 = vmatpush.bf16.msra.mxu0 %v474
  %625 = vmatpush.bf16.msra.mxu0 %v473
  %626 = vmatpush.bf16.msra.mxu0 %v472
  %627 = vmatpush.bf16.msra.mxu0 %v471
  %628 = vmatpush.bf16.msra.mxu0 %v470
  %629 = vmatpush.bf16.msra.mxu0 %v469
  %630 = vmatmul.bf16.gmra.mxu0 %v40
  %v631 = vpop.f32.mrf.mxu0
  %v632 = vadd.f32 %v619, %v631
  %v633 = vpop.f32.mrf.mxu0
  %634 = vdwg.mxu0
  %635 = vmatpush.bf16.msra.mxu0 %v484
  %636 = vmatpush.bf16.msra.mxu0 %v483
  %637 = vmatpush.bf16.msra.mxu0 %v482
  %638 = vmatpush.bf16.msra.mxu0 %v481
  %639 = vmatpush.bf16.msra.mxu0 %v480
  %640 = vmatpush.bf16.msra.mxu0 %v479
  %641 = vmatpush.bf16.msra.mxu0 %v478
  %642 = vmatpush.bf16.msra.mxu0 %v477
  %643 = vmatmul.bf16.gmra.mxu0 %v41
  %v644 = vpop.f32.mrf.mxu0
  %v645 = vadd.f32 %v632, %v644
  %v646 = vpop.f32.mrf.mxu0
  %647 = vdwg.mxu0
  %648 = vmatpush.bf16.msra.mxu0 %v492
  %649 = vmatpush.bf16.msra.mxu0 %v491
  %650 = vmatpush.bf16.msra.mxu0 %v490
  %651 = vmatpush.bf16.msra.mxu0 %v489
  %652 = vmatpush.bf16.msra.mxu0 %v488
  %653 = vmatpush.bf16.msra.mxu0 %v487
  %654 = vmatpush.bf16.msra.mxu0 %v486
  %655 = vmatpush.bf16.msra.mxu0 %v485
  %656 = vmatmul.bf16.gmra.mxu0 %v42
  %v657 = vpop.f32.mrf.mxu0
  %v658 = vadd.f32 %v645, %v657
  %v659 = vpop.f32.mrf.mxu0
  %660 = vdwg.mxu0
  %v661 = vpack.c.bf16 %v658, %v658
  %v662 = vld [vmem:[%s3] sm:$0xff]
  %v663 = vld [vmem:[%s3 + $0x8] sm:$0xf]
  %v664 = vld [vmem:[%s3 + $0xc] sm:$0xff]
  %v665 = vld [vmem:[%s3 + $0x14] sm:$0xf]
  %v666 = vld [vmem:[%s3 + $0x18] sm:$0xff]
  %v667 = vld [vmem:[%s3 + $0x20] sm:$0xf]
  %v668 = vld [vmem:[%s3 + $0x24] sm:$0xff]
  %v669 = vld [vmem:[%s3 + $0x2c] sm:$0xf]
  %v678 = vunpack.c.l.b16 %v662
  %v679 = vunpack.c.h.b16 %v662
  %v680 = vunpack.c.l.b16 %v663
  %v681 = vunpack.c.l.b16 %v664
  %v682 = vunpack.c.h.b16 %v664
  %v683 = vunpack.c.l.b16 %v665
  %v684 = vunpack.c.l.b16 %v666
  %v685 = vunpack.c.h.b16 %v666
  %v686 = vunpack.c.l.b16 %v667
  %v687 = vunpack.c.l.b16 %v668
  %v688 = vunpack.c.h.b16 %v668
  %v689 = vunpack.c.l.b16 %v669
  %v690 = vpack.c.b16 %v681, %v678
  %v691 = vpack.c.b16 %v682, %v679
  %v692 = vpack.c.b16 %v683, %v680
  %v693 = vpack.c.b16 %v687, %v684
  %v694 = vpack.c.b16 %v688, %v685
  %v695 = vpack.c.b16 %v689, %v686
  %vm702 = vcmask 261120
  %v704 = vsel %vm702, %v661, 0
  %706 = vmatpush.bf16.msra.mxu0 0
  %707 = vmatpush.bf16.msra.mxu0 0
  %708 = vmatpush.bf16.msra.mxu0 0
  %709 = vmatpush.bf16.msra.mxu0 0
  %710 = vmatpush.bf16.msra.mxu0 0
  %711 = vmatpush.bf16.msra.mxu0 0
  %712 = vmatpush.bf16.msra.mxu0 %v693
  %713 = vmatpush.bf16.msra.mxu0 %v690
  %714 = vmatmul.bf16.gmra.mxu0 %v704
  %v715 = vpop.f32.mrf.mxu0
  %v716 = vadd.f32 0.0, %v715
  %v717 = vpop.f32.mrf.mxu0
  %718 = vdwg.mxu0
  %719 = vmatpush.bf16.msra.mxu0 0
  %720 = vmatpush.bf16.msra.mxu0 0
  %721 = vmatpush.bf16.msra.mxu0 0
  %722 = vmatpush.bf16.msra.mxu0 0
  %723 = vmatpush.bf16.msra.mxu0 0
  %724 = vmatpush.bf16.msra.mxu0 0
  %725 = vmatpush.bf16.msra.mxu0 %v694
  %726 = vmatpush.bf16.msra.mxu0 %v691
  %727 = vmatmul.bf16.gmra.mxu0 %v704
  %v728 = vpop.f32.mrf.mxu0
  %v729 = vadd.f32 0.0, %v728
  %v730 = vpop.f32.mrf.mxu0
  %731 = vdwg.mxu0
  %732 = vmatpush.bf16.msra.mxu0 0
  %733 = vmatpush.bf16.msra.mxu0 0
  %734 = vmatpush.bf16.msra.mxu0 0
  %735 = vmatpush.bf16.msra.mxu0 0
  %736 = vmatpush.bf16.msra.mxu0 0
  %737 = vmatpush.bf16.msra.mxu0 0
  %738 = vmatpush.bf16.msra.mxu0 %v695
  %739 = vmatpush.bf16.msra.mxu0 %v692
  %740 = vmatmul.bf16.gmra.mxu0 %v704
  %v741 = vpop.f32.mrf.mxu0
  %v742 = vadd.f32 0.0, %v741
  %v743 = vpop.f32.mrf.mxu0
  %744 = vdwg.mxu0
  %v745 = vld [vmem:[%s6 + $0x1] sm:$0x1]
  %v746 = vperm.slane %v745, 0
  %v747 = vadd.f32 %v716, %v746
  %748 = vst [vmem:[%s7] sm:$0xff] %v747
  %v749 = vld [vmem:[%s1] sm:$0xff]
  %v750 = vpack.c.bf16 %v749, %v749
  %v751 = vld [vmem:[%s3 + $0x4] sm:$0xff]
  %v752 = vld [vmem:[%s3 + $0x10] sm:$0xff]
  %v753 = vld [vmem:[%s3 + $0x1c] sm:$0xff]
  %v754 = vld [vmem:[%s3 + $0x28] sm:$0xff]
  %v759 = vunpack.c.l.b16 %v751
  %v760 = vunpack.c.h.b16 %v751
  %v761 = vunpack.c.l.b16 %v752
  %v762 = vunpack.c.h.b16 %v752
  %v763 = vunpack.c.l.b16 %v753
  %v764 = vunpack.c.h.b16 %v753
  %v765 = vunpack.c.l.b16 %v754
  %v766 = vunpack.c.h.b16 %v754
  %v767 = vpack.c.b16 %v761, %v759
  %v768 = vpack.c.b16 %v762, %v760
  %v769 = vpack.c.b16 %v765, %v763
  %v770 = vpack.c.b16 %v766, %v764
  %v776 = vsel %vm702, %v750, 0
  %778 = vmatpush.bf16.msra.mxu0 0
  %779 = vmatpush.bf16.msra.mxu0 0
  %780 = vmatpush.bf16.msra.mxu0 0
  %781 = vmatpush.bf16.msra.mxu0 0
  %782 = vmatpush.bf16.msra.mxu0 0
  %783 = vmatpush.bf16.msra.mxu0 0
  %784 = vmatpush.bf16.msra.mxu0 %v769
  %785 = vmatpush.bf16.msra.mxu0 %v767
  %786 = vmatmul.bf16.gmra.mxu0 %v776
  %v787 = vpop.f32.mrf.mxu0
  %v788 = vadd.f32 0.0, %v787
  %v789 = vpop.f32.mrf.mxu0
  %790 = vdwg.mxu0
  %791 = vmatpush.bf16.msra.mxu0 0
  %792 = vmatpush.bf16.msra.mxu0 0
  %793 = vmatpush.bf16.msra.mxu0 0
  %794 = vmatpush.bf16.msra.mxu0 0
  %795 = vmatpush.bf16.msra.mxu0 0
  %796 = vmatpush.bf16.msra.mxu0 0
  %797 = vmatpush.bf16.msra.mxu0 %v770
  %798 = vmatpush.bf16.msra.mxu0 %v768
  %799 = vmatmul.bf16.gmra.mxu0 %v776
  %v800 = vpop.f32.mrf.mxu0
  %v801 = vadd.f32 0.0, %v800
  %v802 = vpop.f32.mrf.mxu0
  %803 = vdwg.mxu0
  %v804 = vadd.f32 %v729, %v788
  %v805 = vadd.f32 %v742, %v801
  %s806 = scalar_lea.vmem %s6, 5
  %v807 = vld [vmem:[%s806] ss:$4 sm:$0x3]
  %v809 = vperm.slane %v807, 0
  %v810 = vperm.slane %v807, 1
  %v813 = vadd.f32 %v804, %v809
  %v814 = vadd.f32 %v805, %v810
  %vm815 = vcmp.gt.f32.partialorder %v813, 0.0
  %vm816 = vcmp.gt.f32.partialorder %v814, 0.0
  %v817 = vmul.f32 %v813, 0.01
  %v818 = vmul.f32 %v814, 0.01
  %v819 = vsel %vm815, %v813, %v817
  %v820 = vsel %vm816, %v814, %v818
  %v821 = vpack.c.bf16 %v819, %v819
  %v822 = vpack.c.bf16 %v820, %v820
  %v823 = vld [vmem:[%s4] sm:$0xf]
  %v824 = vld [vmem:[%s4 + $0x4] sm:$0xf]
  %v825 = vld [vmem:[%s4 + $0x8] sm:$0xf]
  %v826 = vld [vmem:[%s4 + $0xc] sm:$0xf]
  %v827 = vld [vmem:[%s4 + $0x10] sm:$0xf]
  %v828 = vld [vmem:[%s4 + $0x14] sm:$0xf]
  %v829 = vld [vmem:[%s4 + $0x18] sm:$0xf]
  %v830 = vld [vmem:[%s4 + $0x1c] sm:$0xf]
  %v831 = vld [vmem:[%s4 + $0x20] sm:$0xf]
  %v832 = vld [vmem:[%s4 + $0x24] sm:$0xf]
  %v833 = vld [vmem:[%s4 + $0x28] sm:$0xf]
  %v834 = vld [vmem:[%s4 + $0x2c] sm:$0xf]
  %v835 = vld [vmem:[%s4 + $0x30] sm:$0xf]
  %v836 = vld [vmem:[%s4 + $0x34] sm:$0xf]
  %v837 = vld [vmem:[%s4 + $0x38] sm:$0xf]
  %v838 = vld [vmem:[%s4 + $0x3c] sm:$0xf]
  %v839 = vld [vmem:[%s4 + $0x40] sm:$0xf]
  %v840 = vld [vmem:[%s4 + $0x44] sm:$0xf]
  %v841 = vld [vmem:[%s4 + $0x48] sm:$0xf]
  %v842 = vld [vmem:[%s4 + $0x4c] sm:$0xf]
  %v843 = vld [vmem:[%s4 + $0x50] sm:$0xf]
  %v844 = vld [vmem:[%s4 + $0x54] sm:$0xf]
  %v845 = vld [vmem:[%s4 + $0x58] sm:$0xf]
  %v846 = vld [vmem:[%s4 + $0x5c] sm:$0xf]
  %v847 = vld [vmem:[%s4 + $0x60] sm:$0xf]
  %v848 = vld [vmem:[%s4 + $0x64] sm:$0xf]
  %v849 = vld [vmem:[%s4 + $0x68] sm:$0xf]
  %v850 = vld [vmem:[%s4 + $0x6c] sm:$0xf]
  %v851 = vld [vmem:[%s4 + $0x70] sm:$0xf]
  %v852 = vld [vmem:[%s4 + $0x74] sm:$0xf]
  %v853 = vld [vmem:[%s4 + $0x78] sm:$0xf]
  %v854 = vld [vmem:[%s4 + $0x7c] sm:$0xf]
  %v855 = vld [vmem:[%s6 + $0x2] sm:$0x1]
  %v856 = vperm.slane %v855, 0
  %v889 = vunpack.c.l.b16 %v823
  %v890 = vunpack.c.l.b16 %v824
  %v891 = vunpack.c.l.b16 %v825
  %v892 = vunpack.c.l.b16 %v826
  %v893 = vunpack.c.l.b16 %v827
  %v894 = vunpack.c.l.b16 %v828
  %v895 = vunpack.c.l.b16 %v829
  %v896 = vunpack.c.l.b16 %v830
  %v897 = vunpack.c.l.b16 %v831
  %v898 = vunpack.c.l.b16 %v832
  %v899 = vunpack.c.l.b16 %v833
  %v900 = vunpack.c.l.b16 %v834
  %v901 = vunpack.c.l.b16 %v835
  %v902 = vunpack.c.l.b16 %v836
  %v903 = vunpack.c.l.b16 %v837
  %v904 = vunpack.c.l.b16 %v838
  %v905 = vunpack.c.l.b16 %v839
  %v906 = vunpack.c.l.b16 %v840
  %v907 = vunpack.c.l.b16 %v841
  %v908 = vunpack.c.l.b16 %v842
  %v909 = vunpack.c.l.b16 %v843
  %v910 = vunpack.c.l.b16 %v844
  %v911 = vunpack.c.l.b16 %v845
  %v912 = vunpack.c.l.b16 %v846
  %v913 = vunpack.c.l.b16 %v847
  %v914 = vunpack.c.l.b16 %v848
  %v915 = vunpack.c.l.b16 %v849
  %v916 = vunpack.c.l.b16 %v850
  %v917 = vunpack.c.l.b16 %v851
  %v918 = vunpack.c.l.b16 %v852
  %v919 = vunpack.c.l.b16 %v853
  %v920 = vunpack.c.l.b16 %v854
  %v921 = vpack.c.b16 %v890, %v889
  %v922 = vpack.c.b16 %v892, %v891
  %v923 = vpack.c.b16 %v894, %v893
  %v924 = vpack.c.b16 %v896, %v895
  %v925 = vpack.c.b16 %v898, %v897
  %v926 = vpack.c.b16 %v900, %v899
  %v927 = vpack.c.b16 %v902, %v901
  %v928 = vpack.c.b16 %v904, %v903
  %v929 = vpack.c.b16 %v906, %v905
  %v930 = vpack.c.b16 %v908, %v907
  %v931 = vpack.c.b16 %v910, %v909
  %v932 = vpack.c.b16 %v912, %v911
  %v933 = vpack.c.b16 %v914, %v913
  %v934 = vpack.c.b16 %v916, %v915
  %v935 = vpack.c.b16 %v918, %v917
  %v936 = vpack.c.b16 %v920, %v919
  %953 = vmatpush.bf16.msra.mxu0 %v928
  %954 = vmatpush.bf16.msra.mxu0 %v927
  %955 = vmatpush.bf16.msra.mxu0 %v926
  %956 = vmatpush.bf16.msra.mxu0 %v925
  %957 = vmatpush.bf16.msra.mxu0 %v924
  %958 = vmatpush.bf16.msra.mxu0 %v923
  %959 = vmatpush.bf16.msra.mxu0 %v922
  %960 = vmatpush.bf16.msra.mxu0 %v921
  %961 = vmatmul.bf16.gmra.mxu0 %v821
  %v962 = vpop.f32.mrf.mxu0
  %v963 = vadd.f32 %v856, %v962
  %v964 = vpop.f32.mrf.mxu0
  %965 = vdwg.mxu0
  %966 = vmatpush.bf16.msra.mxu0 %v936
  %967 = vmatpush.bf16.msra.mxu0 %v935
  %968 = vmatpush.bf16.msra.mxu0 %v934
  %969 = vmatpush.bf16.msra.mxu0 %v933
  %970 = vmatpush.bf16.msra.mxu0 %v932
  %971 = vmatpush.bf16.msra.mxu0 %v931
  %972 = vmatpush.bf16.msra.mxu0 %v930
  %973 = vmatpush.bf16.msra.mxu0 %v929
  %974 = vmatmul.bf16.gmra.mxu0 %v822
  %v975 = vpop.f32.mrf.mxu0
  %v976 = vadd.f32 %v963, %v975
  %v977 = vpop.f32.mrf.mxu0
  %978 = vdwg.mxu0
  %vm979 = vcmp.gt.f32.partialorder %v976, 0.0
  %v980 = vmul.f32 %v976, 0.01
  %v981 = vsel %vm979, %v976, %v980
  %v982 = vpack.c.bf16 %v981, %v981
  %v983 = vld [vmem:[%s5] sm:$0xf]
  %v984 = vld [vmem:[%s5 + $0x4] sm:$0xf]
  %v985 = vld [vmem:[%s5 + $0x8] sm:$0xf]
  %v986 = vld [vmem:[%s5 + $0xc] sm:$0xf]
  %v987 = vld [vmem:[%s5 + $0x10] sm:$0xf]
  %v988 = vld [vmem:[%s5 + $0x14] sm:$0xf]
  %v989 = vld [vmem:[%s5 + $0x18] sm:$0xf]
  %v990 = vld [vmem:[%s5 + $0x1c] sm:$0xf]
  %v991 = vld [vmem:[%s5 + $0x20] sm:$0xf]
  %v992 = vld [vmem:[%s5 + $0x24] sm:$0xf]
  %v993 = vld [vmem:[%s5 + $0x28] sm:$0xf]
  %v994 = vld [vmem:[%s5 + $0x2c] sm:$0xf]
  %v995 = vld [vmem:[%s5 + $0x30] sm:$0xf]
  %v996 = vld [vmem:[%s5 + $0x34] sm:$0xf]
  %v997 = vld [vmem:[%s5 + $0x38] sm:$0xf]
  %v998 = vld [vmem:[%s5 + $0x3c] sm:$0xf]
  %v999 = vld [vmem:[%s6 + $0x6] sm:$0x1]
  %v1000 = vperm.slane %v999, 0
  %v1017 = vunpack.c.l.b16 %v983
  %v1018 = vunpack.c.l.b16 %v984
  %v1019 = vunpack.c.l.b16 %v985
  %v1020 = vunpack.c.l.b16 %v986
  %v1021 = vunpack.c.l.b16 %v987
  %v1022 = vunpack.c.l.b16 %v988
  %v1023 = vunpack.c.l.b16 %v989
  %v1024 = vunpack.c.l.b16 %v990
  %v1025 = vunpack.c.l.b16 %v991
  %v1026 = vunpack.c.l.b16 %v992
  %v1027 = vunpack.c.l.b16 %v993
  %v1028 = vunpack.c.l.b16 %v994
  %v1029 = vunpack.c.l.b16 %v995
  %v1030 = vunpack.c.l.b16 %v996
  %v1031 = vunpack.c.l.b16 %v997
  %v1032 = vunpack.c.l.b16 %v998
  %v1033 = vpack.c.b16 %v1018, %v1017
  %v1034 = vpack.c.b16 %v1020, %v1019
  %v1035 = vpack.c.b16 %v1022, %v1021
  %v1036 = vpack.c.b16 %v1024, %v1023
  %v1037 = vpack.c.b16 %v1026, %v1025
  %v1038 = vpack.c.b16 %v1028, %v1027
  %v1039 = vpack.c.b16 %v1030, %v1029
  %v1040 = vpack.c.b16 %v1032, %v1031
  %1049 = vmatpush.bf16.msra.mxu0 %v1040
  %1050 = vmatpush.bf16.msra.mxu0 %v1039
  %1051 = vmatpush.bf16.msra.mxu0 %v1038
  %1052 = vmatpush.bf16.msra.mxu0 %v1037
  %1053 = vmatpush.bf16.msra.mxu0 %v1036
  %1054 = vmatpush.bf16.msra.mxu0 %v1035
  %1055 = vmatpush.bf16.msra.mxu0 %v1034
  %1056 = vmatpush.bf16.msra.mxu0 %v1033
  %1057 = vmatmul.bf16.gmra.mxu0 %v982
  %v1058 = vpop.f32.mrf.mxu0
  %v1059 = vadd.f32 %v1000, %v1058
  %v1060 = vpop.f32.mrf.mxu0
  %1061 = vdwg.mxu0
  %v1062 = vsub.f32 0.0, %v1059
  %v1063 = vmul.f32 %v1062, 1.442695
  %v1064 = vpow.pop %v1063
  %v1065 = vadd.f32 %v1064, 1.0
  %v1066 = vrcp.pop %v1065
  %v1067 = vmul.f32 %v1065, %v1066
  %v1068 = vsub.f32 1.0, %v1067
  %v1069 = vmul.f32 %v1066, %v1068
  %v1070 = vadd.f32 %v1066, %v1069
  %vm1071 = vweird.f32 %v1065
  %vm1072 = vweird.f32 %v1066
  %vm1073 = vmor %vm1071, %vm1072
  %v1074 = vsel %vm1073, %v1066, %v1070
  %v1075 = vand.u32 2147483647, %v1065
  %vm1076 = vcmp.eq.f32.partialorder %v1075, 8.507059e+37
  %v1077 = vand.u32 %v1065, 2147483648
  %v1078 = vor.u32 1.1754944e-38, %v1077
  %v1079 = vsel %vm1076, %v1078, %v1074
  %v1080 = vmul.f32 1.0, %v1079
  %v1081 = vsub.f32 1.0, %v1080
  %v1082 = vlaneseq
  %v1083 = vand.u32 %v1082, 127
  %vm1084 = vcmp.eq.s32.totalorder %v1083, 0
  %vm1085 = vcmp.eq.s32.totalorder %v1083, 1
  %1087 = vset.pattern.permute.xlu0 0
  %1088 = vperm.xlu0 %1087, %v1080
  %v1089 = vpop.permute.xlu0 %1088
  %v1091 = vsel %vm1085, %v1089, 0.0
  %1093 = vset.pattern.permute.xlu0 0
  %1094 = vperm.xlu0 %1093, %v1081
  %v1095 = vpop.permute.xlu0 %1094
  %v1097 = vsel %vm1084, %v1095, %v1091
  %1098 = vst [vmem:[%s7 + $0x8] sm:$0xff] %v1097
  // Predicated region
  $region30: #{new_model_forward.1} parent=0 // pred_check
    _
  $region31: #{new_model_forward.1} parent=0 // pred_check_branch
    %1100 = sbr.rel (0) target = $region33
  $region32: #{new_model_forward.1} parent=0 // pred_region
    _
  $region33: #{new_model_forward.1} parent=0 // pred_fallthru
    _
  // Predicated region
  $region34: #{new_model_forward.1} parent=0 // pred_check
    _
  $region35: #{new_model_forward.1} parent=0 // pred_check_branch
    %1102 = sbr.rel (0) target = $region37
  $region36: #{new_model_forward.1} parent=0 // pred_region
    _
  $region37: #{new_model_forward.1} parent=0 // pred_fallthru
    _

</llo_original>
